<compile_context>
chip_gen: v7x
topology: tpu7x:2x2x1
jax: 0.10.0
libtpu: 0.0.40
codegen_flags: <defaults>
</compile_context>

<pallas_src>
import jax
import jax.numpy as jnp
from jax.experimental import pallas as pl
from jax.experimental.pallas import tpu as pltpu

# ---- small, module-consistent sizes -------------------------------------
CB       = 2    # batch chunk processed per grid step
MEM      = 8    # mem_size  (dialog turns)
EMB      = 32   # emb_size
COORDI   = 4    # coordi_size (items per outfit candidate)
NUM_RNK  = 3    # num_rnk   (candidates to rank)
HID      = 64   # eval_node hidden width
EVAL_OUT = 16   # evaluation feature width per candidate
CONCAT   = EMB * (1 + COORDI)   # req + COORDI item embeddings = 160
ROWS     = CB * NUM_RNK         # candidate rows per chunk (candidate-major)

LANES    = 128
IN_ROWS  = ((CB * MEM + ROWS + 7) // 8) * 8   # 24 rows per chunk input slab
OUT_ROWS = 8                                  # one (8,128) output tile / chunk

# ---- packed parameter slab layout (rows x 128 lanes, f32, 8-row aligned) --
R_WREQ   = 0                     # (EMB, EMB)            rows   0.. 31
R_W1R    = 32                    # (EMB, HID)            rows  32.. 63
R_W1C    = 64                    # (COORDI*EMB, HID)     rows  64..191
R_W2     = 192                   # (HID, EVAL_OUT)       rows 192..255
R_W3     = 256                   # (NUM_RNK*EVAL_OUT, NUM_RNK) rows 256..303
R_BIAS   = 304                   # 1 row: breq[0:32] b1[32:96] b2[96:112]
R_B3W    = 312                   # 1 row: b3 at lanes 0:NUM_RNK
R_LIDX   = 320                   # 1 row: lane index 0..127 (f32)
R_AVG    = 328                   # (CB, CB*MEM) mean-pool matrix
R_SEL    = 336                   # (ROWS, CB) candidate-replication 0/1 matrix
R_ROWPAD = 344                   # (OUT_ROWS, CB) output row-placement matrix
SLAB_ROWS = 352                  # multiple of 8


def gaia_kernel(x_ref, w_ref, out_ref):
    f32 = jnp.float32

    dlg_flat = x_ref[0:CB * MEM, 0:EMB]                  # (16, 32) batch-major
    crd_flat = x_ref[CB * MEM:CB * MEM + ROWS, :]        # (6, 128) cand-major

    bias = w_ref[R_BIAS:R_BIAS + 1, :]                   # (1, 128)

    # ---------------- RequirementNet4 (stand-in) ----------------
    # mean-pool folded into the MXU via the precomputed averaging matrix.
    avg = w_ref[R_AVG:R_AVG + CB, 0:CB * MEM]            # (CB, CB*MEM)
    pooled = jnp.dot(avg, dlg_flat, preferred_element_type=f32)       # (CB, EMB)
    wreq = w_ref[R_WREQ:R_WREQ + EMB, 0:EMB]
    breq = bias[:, 0:EMB]
    req = jnp.tanh(jnp.dot(pooled, wreq, preferred_element_type=f32) + breq)

    # ---------------- PolicyNet4 (stand-in), all candidates in one pass ----
    # h = relu(req @ w1[:EMB] + crd @ w1[EMB:] + b1); the req part is computed
    # once per batch row and replicated to candidate rows with the 0/1 `sel`
    # matmul (no sublane relayouts / concatenations).
    w1r = w_ref[R_W1R:R_W1R + EMB, 0:HID]
    b1 = bias[:, EMB:EMB + HID]
    hreq = jnp.dot(req, w1r, preferred_element_type=f32) + b1         # (CB, HID)
    sel = w_ref[R_SEL:R_SEL + ROWS, 0:CB]                              # (ROWS, CB)
    hreq_all = jnp.dot(sel, hreq, preferred_element_type=f32)          # (ROWS, HID)

    w1c = w_ref[R_W1C:R_W1C + COORDI * EMB, 0:HID]                     # (128, HID)
    hcrd = jnp.dot(crd_flat, w1c, preferred_element_type=f32)          # (ROWS, HID)
    h = jnp.maximum(hreq_all + hcrd, 0.0)

    w2 = w_ref[R_W2:R_W2 + HID, 0:EVAL_OUT]
    b2 = bias[:, EMB + HID:EMB + HID + EVAL_OUT]
    evals = jnp.dot(h, w2, preferred_element_type=f32) + b2            # (ROWS, 16)

    # Head: logits[b, j] = b3[j] + sum_r evals[r*CB + b, :] @ w3_block_r[:, j].
    # w3 lives at lanes 0..NUM_RNK-1 of a zeroed slab, so accumulating with the
    # full 128-lane weight slices yields the logits already in wide lane layout
    # (lanes 0..2 = logits, lanes 3..127 = 0) -- no post-hoc placement needed.
    logits_wide = w_ref[R_B3W:R_B3W + 1, :]                            # (1, 128)
    for r in range(NUM_RNK):                                           # static
        e_r = evals[r * CB:(r + 1) * CB, :]                            # (CB, 16)
        w3w = w_ref[R_W3 + r * EVAL_OUT:R_W3 + (r + 1) * EVAL_OUT, :]  # (16, 128)
        logits_wide = logits_wide + jnp.dot(e_r, w3w,
                                            preferred_element_type=f32)
    # logits_wide: (CB, 128)

    # Fused argmax (first-index tie-break, matching torch.argmax) computed in
    # the wide layout with the precomputed lane-index row.
    lidx = w_ref[R_LIDX:R_LIDX + 1, :]                                 # (1, 128)
    valid = lidx < float(NUM_RNK)
    masked = jnp.where(valid, logits_wide, -1e30)
    maxv = jnp.max(masked, axis=1, keepdims=True)
    preds_f = jnp.min(jnp.where((masked == maxv) & valid, lidx, float(LANES)),
                      axis=1, keepdims=True)                           # (CB, 1)

    # Place preds at lane NUM_RNK (which is guaranteed 0 in logits_wide), pad
    # to 8 sublanes with a tiny 0/1 matmul, and do ONE unmasked full-tile store.
    top = logits_wide + jnp.where(lidx == float(NUM_RNK), preds_f, 0.0)
    rowpad = w_ref[R_ROWPAD:R_ROWPAD + OUT_ROWS, 0:CB]                 # (8, CB)
    out_ref[...] = jnp.dot(rowpad, top, preferred_element_type=f32)    # (8, 128)


def _build_input_slab(dlg, crd):
    """Pack dlg + crd into one lane-dense (n_chunks*IN_ROWS, 128) f32 slab."""
    n = dlg.shape[0]
    n_chunks = n // CB
    dlg_part = dlg.reshape(n_chunks, CB * MEM, EMB).astype(jnp.float32)
    dlg_part = jnp.pad(dlg_part, ((0, 0), (0, 0), (0, LANES - EMB)))
    crd_part = crd.reshape(n_chunks, CB, NUM_RNK, COORDI * EMB).astype(jnp.float32)
    crd_part = jnp.transpose(crd_part, (0, 2, 1, 3)).reshape(
        n_chunks, ROWS, COORDI * EMB)                       # row = r*CB + b
    pad = jnp.zeros((n_chunks, IN_ROWS - CB * MEM - ROWS, LANES), jnp.float32)
    x = jnp.concatenate([dlg_part, crd_part, pad], axis=1)
    return x.reshape(n_chunks * IN_ROWS, LANES)


@jax.jit
def gaia_forward(dlg, crd, param_slab):
    """Eval-mode Model.forward: returns (logits, preds)."""
    n = dlg.shape[0]
    assert n % CB == 0
    n_chunks = n // CB
    x = _build_input_slab(dlg, crd)

    out = pl.pallas_call(
        gaia_kernel,
        out_shape=jax.ShapeDtypeStruct((n_chunks * OUT_ROWS, LANES), jnp.float32),
        grid_spec=pltpu.PrefetchScalarGridSpec(
            num_scalar_prefetch=0,
            grid=(n_chunks,),
            in_specs=[
                pl.BlockSpec((IN_ROWS, LANES), lambda i: (i, 0)),
                # Constant index_map: the ~176 KB weight slab stays VMEM-resident
                # across grid steps instead of being re-DMA'd per chunk.
                pl.BlockSpec((SLAB_ROWS, LANES), lambda i: (0, 0)),
            ],
            out_specs=pl.BlockSpec((OUT_ROWS, LANES), lambda i: (i, 0)),
        ),
        compiler_params=pltpu.CompilerParams(
            dimension_semantics=("parallel",)),
    )(x, param_slab)

    out = out.reshape(n_chunks, OUT_ROWS, LANES)
    logits = out[:, 0:CB, 0:NUM_RNK].reshape(n, NUM_RNK)
    preds = out[:, 0:CB, NUM_RNK].reshape(n).astype(jnp.int32)
    return logits, preds


# ---- parameter construction ----------------------------------------------
def _place(slab, row, arr2d):
    r, c = arr2d.shape
    return slab.at[row:row + r, 0:c].set(arr2d)


def pack_params(raw):
    slab = jnp.zeros((SLAB_ROWS, LANES), jnp.float32)
    slab = _place(slab, R_WREQ, raw["wreq"])
    slab = _place(slab, R_W1R, raw["w1"][:EMB])
    slab = _place(slab, R_W1C, raw["w1"][EMB:])
    slab = _place(slab, R_W2, raw["w2"])
    slab = _place(slab, R_W3, raw["w3"])

    bias_row = jnp.zeros((1, LANES), jnp.float32)
    bias_row = bias_row.at[0, 0:EMB].set(raw["breq"])
    bias_row = bias_row.at[0, EMB:EMB + HID].set(raw["b1"])
    bias_row = bias_row.at[0, EMB + HID:EMB + HID + EVAL_OUT].set(raw["b2"])
    slab = _place(slab, R_BIAS, bias_row)

    b3w = jnp.zeros((1, LANES), jnp.float32).at[0, 0:NUM_RNK].set(raw["b3"])
    slab = _place(slab, R_B3W, b3w)

    lidx = jnp.arange(LANES, dtype=jnp.float32)[None, :]
    slab = _place(slab, R_LIDX, lidx)

    # mean-pool matrix: pooled[b] = mean_m dlg[b, m]
    avg = jnp.zeros((CB, CB * MEM), jnp.float32)
    for b in range(CB):
        avg = avg.at[b, b * MEM:(b + 1) * MEM].set(1.0 / MEM)
    slab = _place(slab, R_AVG, avg)

    # candidate replication: row r*CB + b picks batch row b
    sel = jnp.zeros((ROWS, CB), jnp.float32)
    for r in range(NUM_RNK):
        for b in range(CB):
            sel = sel.at[r * CB + b, b].set(1.0)
    slab = _place(slab, R_SEL, sel)

    # output row placement: row b of the payload goes to sublane b, rest zero
    rowpad = jnp.zeros((OUT_ROWS, CB), jnp.float32)
    for b in range(CB):
        rowpad = rowpad.at[b, b].set(1.0)
    slab = _place(slab, R_ROWPAD, rowpad)
    return slab


def init_params(key):
    ks = jax.random.split(key, 4)
    s = 0.05
    raw = {
        "wreq": jax.random.normal(ks[0], (EMB, EMB), jnp.float32) * s,
        "breq": jnp.zeros((EMB,), jnp.float32),
        "w1":   jax.random.normal(ks[1], (CONCAT, HID), jnp.float32) * s,
        "b1":   jnp.zeros((HID,), jnp.float32),
        "w2":   jax.random.normal(ks[2], (HID, EVAL_OUT), jnp.float32) * s,
        "b2":   jnp.zeros((EVAL_OUT,), jnp.float32),
        "w3":   jax.random.normal(ks[3], (NUM_RNK * EVAL_OUT, NUM_RNK),
                                  jnp.float32) * s,
        "b3":   jnp.zeros((NUM_RNK,), jnp.float32),
    }
    return raw, pack_params(raw)


# ---- pure-JAX reference (mirrors the original per-candidate loop) ---------
def reference_forward(dlg, crd, raw):
    pooled = jnp.mean(dlg, axis=1)
    req = jnp.tanh(pooled @ raw["wreq"] + raw["breq"])
    evals = []
    for r in range(NUM_RNK):
        x = jnp.concatenate([req] + [crd[:, r, c, :] for c in range(COORDI)],
                            axis=-1)
        h = jnp.maximum(x @ raw["w1"] + raw["b1"], 0.0)
        evals.append(h @ raw["w2"] + raw["b2"])
    flat = jnp.concatenate(evals, axis=-1)
    logits = flat @ raw["w3"] + raw["b3"]
    return logits, jnp.argmax(logits, axis=1)


if __name__ == "__main__":
    root = jax.random.PRNGKey(0)
    k_dlg, k_crd, k_par = jax.random.split(root, 3)

    N = 4   # demo batch: 2 chunks of CB=2 so the grid actually iterates
    dlg = jax.random.normal(k_dlg, (N, MEM, EMB), jnp.float32)
    crd = jax.random.normal(k_crd, (N, NUM_RNK, COORDI, EMB), jnp.float32)
    raw, slab = init_params(k_par)

    logits, preds = gaia_forward(dlg, crd, slab)
    jax.block_until_ready((logits, preds))

    ref_logits, ref_preds = reference_forward(dlg, crd, raw)

    assert logits.shape == (N, NUM_RNK)
    assert preds.shape == (N,)
    assert bool(jnp.all(jnp.isfinite(logits)))
    assert bool(jnp.allclose(logits, ref_logits, atol=1e-3, rtol=1e-3))
    assert bool(jnp.all(preds == ref_preds))
    print("KERNEL_OK")
</pallas_src>

<mosaic_0001>
module attributes {stable_mosaic.version = 11 : i64} {
  func.func @gaia_kernel(%arg0: i32, %arg1: memref<24x128xf32, #tpu.memory_space<vmem>>, %arg2: memref<352x128xf32, #tpu.memory_space<vmem>>, %arg3: memref<8x128xf32, #tpu.memory_space<vmem>>) attributes {dimension_semantics = [#tpu.dimension_semantics<parallel>], iteration_bounds = array<i64: 2>, scalar_prefetch = 0 : i64, scratch_operands = 0 : i64, tpu.core_type = #tpu.core_type<tc>, window_params = [{transform_indices = @transform_0, window_bounds = array<i64: 24, 128>}, {pipeline_mode = #tpu.pipeline_mode<synchronous>, transform_indices = @transform_1, window_bounds = array<i64: 352, 128>}, {transform_indices = @transform_2, window_bounds = array<i64: 8, 128>}]} {
    %c0 = arith.constant 0 : index
    %c0_0 = arith.constant 0 : index
    %0 = vector.load %arg1[%c0, %c0_0] : memref<24x128xf32, #tpu.memory_space<vmem>>, vector<16x32xf32>
    %c16 = arith.constant 16 : index
    %c0_1 = arith.constant 0 : index
    %1 = vector.load %arg1[%c16, %c0_1] : memref<24x128xf32, #tpu.memory_space<vmem>>, vector<6x128xf32>
    %c304 = arith.constant 304 : index
    %c0_2 = arith.constant 0 : index
    %2 = vector.load %arg2[%c304, %c0_2] : memref<352x128xf32, #tpu.memory_space<vmem>>, vector<1x128xf32>
    %c328 = arith.constant 328 : index
    %c0_3 = arith.constant 0 : index
    %3 = vector.load %arg2[%c328, %c0_3] : memref<352x128xf32, #tpu.memory_space<vmem>>, vector<2x16xf32>
    %cst = arith.constant dense<0.000000e+00> : vector<2x32xf32>
    %4 = tpu.matmul %3, %0, %cst {dimension_numbers = #tpu.dot_dimension_numbers<[1], [0], [0], [1], [0, 0, 1, 1], [], []>} : vector<2x16xf32>, vector<16x32xf32>, vector<2x32xf32> -> vector<2x32xf32>
    %c0_4 = arith.constant 0 : index
    %c0_5 = arith.constant 0 : index
    %5 = vector.load %arg2[%c0_4, %c0_5] : memref<352x128xf32, #tpu.memory_space<vmem>>, vector<32x32xf32>
    %6 = vector.extract_strided_slice %2 {offsets = [0, 0], sizes = [1, 32], strides = [1, 1]} : vector<1x128xf32> to vector<1x32xf32>
    %cst_6 = arith.constant dense<0.000000e+00> : vector<2x32xf32>
    %7 = tpu.matmul %4, %5, %cst_6 {dimension_numbers = #tpu.dot_dimension_numbers<[1], [0], [0], [1], [0, 0, 1, 1], [], []>} : vector<2x32xf32>, vector<32x32xf32>, vector<2x32xf32> -> vector<2x32xf32>
    %8 = vector.broadcast %6 : vector<1x32xf32> to vector<2x32xf32>
    %9 = arith.addf %7, %8 : vector<2x32xf32>
    %10 = math.tanh %9 : vector<2x32xf32>
    %c32 = arith.constant 32 : index
    %c0_7 = arith.constant 0 : index
    %11 = vector.load %arg2[%c32, %c0_7] : memref<352x128xf32, #tpu.memory_space<vmem>>, vector<32x64xf32>
    %12 = vector.extract_strided_slice %2 {offsets = [0, 32], sizes = [1, 64], strides = [1, 1]} : vector<1x128xf32> to vector<1x64xf32>
    %cst_8 = arith.constant dense<0.000000e+00> : vector<2x64xf32>
    %13 = tpu.matmul %10, %11, %cst_8 {dimension_numbers = #tpu.dot_dimension_numbers<[1], [0], [0], [1], [0, 0, 1, 1], [], []>} : vector<2x32xf32>, vector<32x64xf32>, vector<2x64xf32> -> vector<2x64xf32>
    %14 = vector.broadcast %12 : vector<1x64xf32> to vector<2x64xf32>
    %15 = arith.addf %13, %14 : vector<2x64xf32>
    %c336 = arith.constant 336 : index
    %c0_9 = arith.constant 0 : index
    %16 = vector.load %arg2[%c336, %c0_9] : memref<352x128xf32, #tpu.memory_space<vmem>>, vector<6x2xf32>
    %cst_10 = arith.constant dense<0.000000e+00> : vector<6x64xf32>
    %17 = tpu.matmul %16, %15, %cst_10 {dimension_numbers = #tpu.dot_dimension_numbers<[1], [0], [0], [1], [0, 0, 1, 1], [], []>} : vector<6x2xf32>, vector<2x64xf32>, vector<6x64xf32> -> vector<6x64xf32>
    %c64 = arith.constant 64 : index
    %c0_11 = arith.constant 0 : index
    %18 = vector.load %arg2[%c64, %c0_11] : memref<352x128xf32, #tpu.memory_space<vmem>>, vector<128x64xf32>
    %cst_12 = arith.constant dense<0.000000e+00> : vector<6x64xf32>
    %19 = tpu.matmul %1, %18, %cst_12 {dimension_numbers = #tpu.dot_dimension_numbers<[1], [0], [0], [1], [0, 0, 1, 1], [], []>} : vector<6x128xf32>, vector<128x64xf32>, vector<6x64xf32> -> vector<6x64xf32>
    %20 = arith.addf %17, %19 : vector<6x64xf32>
    %cst_13 = arith.constant 0.000000e+00 : f32
    %21 = vector.broadcast %cst_13 : f32 to vector<6x64xf32>
    %22 = arith.maximumf %20, %21 : vector<6x64xf32>
    %c192 = arith.constant 192 : index
    %c0_14 = arith.constant 0 : index
    %23 = vector.load %arg2[%c192, %c0_14] : memref<352x128xf32, #tpu.memory_space<vmem>>, vector<64x16xf32>
    %24 = vector.extract_strided_slice %2 {offsets = [0, 96], sizes = [1, 16], strides = [1, 1]} : vector<1x128xf32> to vector<1x16xf32>
    %cst_15 = arith.constant dense<0.000000e+00> : vector<6x16xf32>
    %25 = tpu.matmul %22, %23, %cst_15 {dimension_numbers = #tpu.dot_dimension_numbers<[1], [0], [0], [1], [0, 0, 1, 1], [], []>} : vector<6x64xf32>, vector<64x16xf32>, vector<6x16xf32> -> vector<6x16xf32>
    %26 = vector.broadcast %24 : vector<1x16xf32> to vector<6x16xf32>
    %27 = arith.addf %25, %26 : vector<6x16xf32>
    %c312 = arith.constant 312 : index
    %c0_16 = arith.constant 0 : index
    %28 = vector.load %arg2[%c312, %c0_16] : memref<352x128xf32, #tpu.memory_space<vmem>>, vector<1x128xf32>
    %29 = vector.extract_strided_slice %27 {offsets = [0, 0], sizes = [2, 16], strides = [1, 1]} : vector<6x16xf32> to vector<2x16xf32>
    %c256 = arith.constant 256 : index
    %c0_17 = arith.constant 0 : index
    %30 = vector.load %arg2[%c256, %c0_17] : memref<352x128xf32, #tpu.memory_space<vmem>>, vector<16x128xf32>
    %cst_18 = arith.constant dense<0.000000e+00> : vector<2x128xf32>
    %31 = tpu.matmul %29, %30, %cst_18 {dimension_numbers = #tpu.dot_dimension_numbers<[1], [0], [0], [1], [0, 0, 1, 1], [], []>} : vector<2x16xf32>, vector<16x128xf32>, vector<2x128xf32> -> vector<2x128xf32>
    %32 = vector.broadcast %28 : vector<1x128xf32> to vector<2x128xf32>
    %33 = arith.addf %32, %31 : vector<2x128xf32>
    %34 = vector.extract_strided_slice %27 {offsets = [2, 0], sizes = [2, 16], strides = [1, 1]} : vector<6x16xf32> to vector<2x16xf32>
    %c272 = arith.constant 272 : index
    %c0_19 = arith.constant 0 : index
    %35 = vector.load %arg2[%c272, %c0_19] : memref<352x128xf32, #tpu.memory_space<vmem>>, vector<16x128xf32>
    %cst_20 = arith.constant dense<0.000000e+00> : vector<2x128xf32>
    %36 = tpu.matmul %34, %35, %cst_20 {dimension_numbers = #tpu.dot_dimension_numbers<[1], [0], [0], [1], [0, 0, 1, 1], [], []>} : vector<2x16xf32>, vector<16x128xf32>, vector<2x128xf32> -> vector<2x128xf32>
    %37 = arith.addf %33, %36 : vector<2x128xf32>
    %38 = vector.extract_strided_slice %27 {offsets = [4, 0], sizes = [2, 16], strides = [1, 1]} : vector<6x16xf32> to vector<2x16xf32>
    %c288 = arith.constant 288 : index
    %c0_21 = arith.constant 0 : index
    %39 = vector.load %arg2[%c288, %c0_21] : memref<352x128xf32, #tpu.memory_space<vmem>>, vector<16x128xf32>
    %cst_22 = arith.constant dense<0.000000e+00> : vector<2x128xf32>
    %40 = tpu.matmul %38, %39, %cst_22 {dimension_numbers = #tpu.dot_dimension_numbers<[1], [0], [0], [1], [0, 0, 1, 1], [], []>} : vector<2x16xf32>, vector<16x128xf32>, vector<2x128xf32> -> vector<2x128xf32>
    %41 = arith.addf %37, %40 : vector<2x128xf32>
    %c320 = arith.constant 320 : index
    %c0_23 = arith.constant 0 : index
    %42 = vector.load %arg2[%c320, %c0_23] : memref<352x128xf32, #tpu.memory_space<vmem>>, vector<1x128xf32>
    %cst_24 = arith.constant 3.000000e+00 : f32
    %43 = vector.broadcast %cst_24 : f32 to vector<1x128xf32>
    %44 = arith.cmpf olt, %42, %43 : vector<1x128xf32>
    %cst_25 = arith.constant -1.000000e+30 : f32
    %45 = vector.shape_cast %44 : vector<1x128xi1> to vector<1x128xi1>
    %46 = vector.broadcast %45 : vector<1x128xi1> to vector<2x128xi1>
    %47 = vector.broadcast %cst_25 : f32 to vector<2x128xf32>
    %48 = arith.select %46, %41, %47 : vector<2x128xi1>, vector<2x128xf32>
    %cst_26 = arith.constant dense<0xFF800000> : vector<2xf32>
    %49 = vector.multi_reduction <maximumf>, %48, %cst_26 [1] : vector<2x128xf32> to vector<2xf32>
    %50 = vector.shape_cast %49 : vector<2xf32> to vector<2x1xf32>
    %51 = vector.broadcast %50 : vector<2x1xf32> to vector<2x128xf32>
    %52 = arith.cmpf oeq, %48, %51 : vector<2x128xf32>
    %53 = vector.broadcast %44 : vector<1x128xi1> to vector<2x128xi1>
    %54 = arith.andi %52, %53 : vector<2x128xi1>
    %cst_27 = arith.constant 1.280000e+02 : f32
    %55 = vector.shape_cast %42 : vector<1x128xf32> to vector<1x128xf32>
    %56 = vector.broadcast %55 : vector<1x128xf32> to vector<2x128xf32>
    %57 = vector.broadcast %cst_27 : f32 to vector<2x128xf32>
    %58 = arith.select %54, %56, %57 : vector<2x128xi1>, vector<2x128xf32>
    %cst_28 = arith.constant dense<0x7F800000> : vector<2xf32>
    %59 = vector.multi_reduction <minimumf>, %58, %cst_28 [1] : vector<2x128xf32> to vector<2xf32>
    %60 = vector.shape_cast %59 : vector<2xf32> to vector<2x1xf32>
    %cst_29 = arith.constant 3.000000e+00 : f32
    %61 = vector.broadcast %cst_29 : f32 to vector<1x128xf32>
    %62 = arith.cmpf oeq, %42, %61 : vector<1x128xf32>
    %cst_30 = arith.constant 0.000000e+00 : f32
    %63 = vector.shape_cast %62 : vector<1x128xi1> to vector<1x128xi1>
    %64 = vector.broadcast %63 : vector<1x128xi1> to vector<2x128xi1>
    %65 = vector.shape_cast %60 : vector<2x1xf32> to vector<2x1xf32>
    %66 = vector.broadcast %65 : vector<2x1xf32> to vector<2x128xf32>
    %67 = vector.broadcast %cst_30 : f32 to vector<2x128xf32>
    %68 = arith.select %64, %66, %67 : vector<2x128xi1>, vector<2x128xf32>
    %69 = arith.addf %41, %68 : vector<2x128xf32>
    %c344 = arith.constant 344 : index
    %c0_31 = arith.constant 0 : index
    %70 = vector.load %arg2[%c344, %c0_31] : memref<352x128xf32, #tpu.memory_space<vmem>>, vector<8x2xf32>
    %cst_32 = arith.constant dense<0.000000e+00> : vector<8x128xf32>
    %71 = tpu.matmul %70, %69, %cst_32 {dimension_numbers = #tpu.dot_dimension_numbers<[1], [0], [0], [1], [0, 0, 1, 1], [], []>} : vector<8x2xf32>, vector<2x128xf32>, vector<8x128xf32> -> vector<8x128xf32>
    %c0_33 = arith.constant 0 : index
    %c0_34 = arith.constant 0 : index
    %72 = vector.load %arg3[%c0_33, %c0_34] : memref<8x128xf32, #tpu.memory_space<vmem>>, vector<8x128xf32>
    tpu.vector_store %arg3[%c0_33, %c0_34], %71 {strides = array<i32>} : memref<8x128xf32, #tpu.memory_space<vmem>>, vector<8x128xf32>,
    return
  }
  func.func @transform_0(%arg0: i32) -> (i32, i32) {
    %c0_i32 = arith.constant 0 : i32
    %c0_i32_0 = arith.constant 0 : i32
    return %arg0, %c0_i32 : i32, i32
  }
  func.func @transform_1(%arg0: i32) -> (i32, i32) {
    %c0_i32 = arith.constant 0 : i32
    %c0_i32_0 = arith.constant 0 : i32
    %c0_i32_1 = arith.constant 0 : i32
    return %c0_i32, %c0_i32_0 : i32, i32
  }
  func.func @transform_2(%arg0: i32) -> (i32, i32) {
    %c0_i32 = arith.constant 0 : i32
    %c0_i32_0 = arith.constant 0 : i32
    return %arg0, %c0_i32 : i32, i32
  }
}

</mosaic_0001>

<llo_original>
// kernel: gaia_forward.1
$region0: #{gaia_forward.1}
  #allocation0 [shape = 'u32[]', space=smem, size = 0x4, offset = 0x4, fixed_abs, tag = 'smem constant byte address 0x4 - core index']
  #allocation1 [shape = 'u32[144,128]{1,0:T(1,128)}', space=vmem, size = 0x12000, scoped, tag = 'internal scratch']
  %s0 = inlined_call_operand.vmem [shape: f32[48,128], index: 0, kind: input, shape index: {}]
  %s1 = inlined_call_operand.hbm [shape: f32[352,128], index: 1, kind: input, shape index: {}]
  %s2 = inlined_call_operand.vmem [shape: f32[16,128], index: 2, kind: output, shape index: {}]
  %s3 = sld [smem:[#allocation0]]
  $region45: #{gaia_forward.1} parent=0
    _
  %s5 = ssub.s32 1, %s3
  %s6 = scalar_select 0, %s5, %s3
  $region1: #{gaia_forward.1} parent=0
    #allocation2 [shape = 'u8[180224]{0}', space=vmem, size = 0x2c000, scoped, tag = 'input window, operand 1, single buffered']
    #allocation3 [shape = 's32[2]{0}', space=sflag, size = 0x8, scoped, tag = 'scoped memory for gaia_forward.1']
    %7 = vsyncpa [#allocation3], 0
    loop: start=0, step=1, limit=4
    $region2: #{gaia_forward.1} parent=1 // loop_pre_header
      _
    $region3: #{gaia_forward.1} parent=1 // loop_header
      %s9 = sphi 0, %s13
      %p10 = scmp.ge.s32.totalorder %s9, 4
      %s19 = sphi 0, %s21
      %s22 = sphi 0, %s19
      %s23 = sphi 0, %s22
      %s39 = sphi 0, %s23
      %s43 = sphi 0, %s43
      %s45 = sphi 0, %s43
      %s46 = sphi 0, %s45
      %s60 = sphi 0, %s46
      %s66 = sphi 0, %s68
      %s69 = sphi 0, %s66
      %s70 = sphi 0, %s69
      %s86 = sphi 0, %s70
    $region4: #{gaia_forward.1} parent=1 // loop_header_branch
      %12 = sbr.rel (%p10) target = $region8
    $region5: #{gaia_forward.1} parent=1 // loop_body
      %s14 = ssub.s32 %s9, 1
      %s15 = ssub.s32 %s9, 2
      %s16 = sadd.s32 %s9, 1
      %s17 = ssub.s32 %s9, %s16
      %p18 = scmp.eq.s32.totalorder %s17, 0
      %s20 = sadd.s32 %s19, 1
      %s21 = scalar_select %p18, %s19, %s20
      %p24 = pneg %p18
      %p25 = scmp.eq.s32.totalorder %s9, 1
      %p26 = por %p24, %p25
      %p27 = scmp.ne.s32.totalorder %s19, %s22
      %p28 = scmp.eq.s32.totalorder %s9, 0
      %p29 = por %p27, %p28
      %p30 = scmp.ne.s32.totalorder %s19, %s22
      %p31 = scmp.eq.s32.totalorder %s14, 1
      %p32 = por %p30, %p31
      %p33 = scmp.ne.s32.totalorder %s22, %s23
      %p34 = scmp.eq.s32.totalorder %s14, 0
      %p35 = por %p33, %p34
      %p36 = scmp.ne.s32.totalorder %s22, %s23
      %p37 = scmp.eq.s32.totalorder %s15, 1
      %p38 = por %p36, %p37
      %p40 = scmp.ne.s32.totalorder %s23, %s39
      %p41 = scmp.eq.s32.totalorder %s15, 0
      %p42 = por %p40, %p41
      %s44 = sadd.s32 %s43, 1
      %p47 = scmp.eq.s32.totalorder %s9, 1
      %p48 = scmp.ne.s32.totalorder %s43, %s45
      %p49 = scmp.eq.s32.totalorder %s9, 0
      %p50 = por %p48, %p49
      %p51 = scmp.ne.s32.totalorder %s43, %s45
      %p52 = scmp.eq.s32.totalorder %s14, 1
      %p53 = por %p51, %p52
      %p54 = scmp.ne.s32.totalorder %s45, %s46
      %p55 = scmp.eq.s32.totalorder %s14, 0
      %p56 = por %p54, %p55
      %p57 = scmp.ne.s32.totalorder %s45, %s46
      %p58 = scmp.eq.s32.totalorder %s15, 1
      %p59 = por %p57, %p58
      %p61 = scmp.ne.s32.totalorder %s46, %s60
      %p62 = scmp.eq.s32.totalorder %s15, 0
      %p63 = por %p61, %p62
      %s64 = ssub.s32 %s9, %s16
      %p65 = scmp.eq.s32.totalorder %s64, 0
      %s67 = sadd.s32 %s66, 1
      %s68 = scalar_select %p65, %s66, %s67
      %p71 = pneg %p65
      %p72 = scmp.eq.s32.totalorder %s9, 1
      %p73 = por %p71, %p72
      %p74 = scmp.ne.s32.totalorder %s66, %s69
      %p75 = scmp.eq.s32.totalorder %s9, 0
      %p76 = por %p74, %p75
      %p77 = scmp.ne.s32.totalorder %s66, %s69
      %p78 = scmp.eq.s32.totalorder %s14, 1
      %p79 = por %p77, %p78
      %p80 = scmp.ne.s32.totalorder %s69, %s70
      %p81 = scmp.eq.s32.totalorder %s14, 0
      %p82 = por %p80, %p81
      %p83 = scmp.ne.s32.totalorder %s69, %s70
      %p84 = scmp.eq.s32.totalorder %s15, 1
      %p85 = por %p83, %p84
      %p87 = scmp.ne.s32.totalorder %s70, %s86
      %p88 = scmp.eq.s32.totalorder %s15, 0
      %p89 = por %p87, %p88
      %p90 = scmp.le.s32.totalorder 1, %s9
      %p91 = scmp.lt.s32.totalorder %s9, 3
      %p92 = pnand %p90, %p91
      %p93 = pneg %p92
      // Predicated region
      $region9: #{gaia_forward.1} parent=5 // pred_check
        _
      $region10: #{gaia_forward.1} parent=5 // pred_check_branch
        %95 = sbr.rel (%p92) target = $region12
      $region11: #{gaia_forward.1} parent=5 // pred_region
        %s96 = ssub.s32 %s9, 1
        // Predicated region
        $region13: #{gaia_forward.1} parent=11 // pred_check
          %p97 = pneg %p56
        $region14: #{gaia_forward.1} parent=11 // pred_check_branch
          %99 = sbr.rel (%p97) target = $region16
        $region15: #{gaia_forward.1} parent=11 // pred_region
          %s101 = ssub.s32 5632, 5632
          %102 = vsyncadd [#allocation3], %s101
          %s103 = sshll.u32 [#allocation2], 4
          %s104 = int_to_ptr.vmem [resolvable:$true] %s103
          %109 = dma.hbm_to_vmem [thread:$0]  %s1, 5632, %s104, [#allocation3], 128, 128, 8
        $region16: #{gaia_forward.1} parent=11 // pred_fallthru
          _
      $region12: #{gaia_forward.1} parent=5 // pred_fallthru
        _
      %p110 = scmp.lt.s32.totalorder %s9, 2
      // Predicated region
      $region17: #{gaia_forward.1} parent=5 // pred_check
        %p111 = pneg %p110
      $region18: #{gaia_forward.1} parent=5 // pred_check_branch
        %113 = sbr.rel (%p111) target = $region20
      $region19: #{gaia_forward.1} parent=5 // pred_region
        // Predicated region
        $region21: #{gaia_forward.1} parent=19 // pred_check
          %p114 = pneg %p29
        $region22: #{gaia_forward.1} parent=19 // pred_check_branch
          %116 = sbr.rel (%p114) target = $region24
        $region23: #{gaia_forward.1} parent=19 // pred_region
          %s117 = smul.u32 3, %s9
          %p118 = scmp.lt.s32.totalorder %s117, 5
          %s119 = scalar_select %p118, %s117, 5
          %s120 = smul.addr %s119, 8
          %s121 = scalar_lea.vmem %s0, %s120
          %s122 = smul.u32 3, %s9
        $region24: #{gaia_forward.1} parent=19 // pred_fallthru
          _
      $region20: #{gaia_forward.1} parent=5 // pred_fallthru
        _
      %p123 = scmp.le.s32.totalorder 1, %s9
      %p124 = scmp.lt.s32.totalorder %s9, 3
      %p125 = pnand %p123, %p124
      %p126 = pneg %p125
      // Predicated region
      $region25: #{gaia_forward.1} parent=5 // pred_check
        _
      $region26: #{gaia_forward.1} parent=5 // pred_check_branch
        %128 = sbr.rel (%p125) target = $region28
      $region27: #{gaia_forward.1} parent=5 // pred_region
        %s129 = ssub.s32 %s9, 1
        // Predicated region
        $region29: #{gaia_forward.1} parent=27 // pred_check
          %p130 = pneg %p56
        $region30: #{gaia_forward.1} parent=27 // pred_check_branch
          %132 = sbr.rel (%p130) target = $region32
        $region31: #{gaia_forward.1} parent=27 // pred_region
          %133 = dma.done [#allocation3], 5632
        $region32: #{gaia_forward.1} parent=27 // pred_fallthru
          _
        %s134 = smul.u32 3, %s14
        %p135 = scmp.lt.s32.totalorder %s134, 5
        %s136 = scalar_select %p135, %s134, 5
        %s137 = smul.addr %s136, 8
        %s138 = scalar_lea.vmem %s0, %s137
        %p139 = pneg %p35
        %p140 = pneg %p32
        %p141 = pneg %p56
        %p142 = pneg %p53
        %p143 = pneg %p82
        %p144 = pneg %p79
        %p145 = scmp.lt.s32.totalorder %s14, 1
        %s146 = scalar_select %p145, %s14, 1
        %s147 = smul.addr %s146, 8
        %s148 = scalar_lea.vmem %s2, %s147
        %s149 = smul.u32 3, %s14
        %p150 = scmp.lt.s32.totalorder %s149, 5
        %s151 = scalar_select %p150, %s149, 5
        %s152 = smul.addr %s151, 8
        %s153 = scalar_lea.vmem %s0, %s152
        %s154 = smul.u32 3, %s14
        %p155 = scmp.lt.s32.totalorder %s14, 1
        %s156 = scalar_select %p155, %s14, 1
        %s157 = smul.addr %s156, 8
        %s158 = scalar_lea.vmem %s2, %s157
        %v159 = vld [vmem:[%s153] sm:$0xff]
        %v160 = vld [vmem:[%s153 + $0x8] sm:$0xff]
        %v161 = vld [vmem:[%s153 + $0x10] sm:$0x3f]
        %v162 = vld [vmem:[#allocation2 + $0x130] sm:$0x1]
        %v163 = vld [vmem:[#allocation2 + $0x148] sm:$0x3]
        %vm164 = vcmask 130048
        %v166 = vsel %vm164, %v163, 0
        %168 = vmatprep.subr.mxu0 0.0
        %169 = vmatpush1.msra.mxu0 %v159
        %170 = vmatprep.subr.mxu0 0.0
        %171 = vmatpush1.msra.mxu0 %v160
        %172 = vmatprep.subr.mxu0 0.0
        %173 = vmatpush1.msra.mxu0 0.0
        %174 = vmatprep.subr.mxu0 0.0
        %175 = vmatpush1.msra.mxu0 0.0
        %176 = vmatprep.subr.mxu0 0.0
        %177 = vmatpush1.msra.mxu0 0.0
        %178 = vmatprep.subr.mxu0 0.0
        %179 = vmatpush1.msra.mxu0 0.0
        %180 = vmatprep.subr.mxu0 0.0
        %181 = vmatpush1.msra.mxu0 0.0
        %182 = vmatprep.subr.mxu0 0.0
        %183 = vmatpush1.msra.mxu0 0.0
        %184 = vmatprep.subr.mxu0 0.0
        %185 = vmatpush1.msra.mxu0 0.0
        %186 = vmatprep.subr.mxu0 0.0
        %187 = vmatpush1.msra.mxu0 0.0
        %188 = vmatprep.subr.mxu0 0.0
        %189 = vmatpush1.msra.mxu0 0.0
        %190 = vmatprep.subr.mxu0 0.0
        %191 = vmatpush1.msra.mxu0 0.0
        %192 = vmatprep.subr.mxu0 0.0
        %193 = vmatpush1.msra.mxu0 0.0
        %194 = vmatprep.subr.mxu0 0.0
        %195 = vmatpush1.msra.mxu0 0.0
        %196 = vmatprep.subr.mxu0 0.0
        %197 = vmatpush1.msra.mxu0 0.0
        %198 = vmatprep.subr.mxu0 0.0
        %199 = vmatpush1.msra.mxu0 0.0
        %200 = vmatprep.subr.mxu0 0.0
        %201 = vmatpush1.msra.mxu0 0.0
        %202 = vmatprep.subr.mxu0 0.0
        %203 = vmatpush1.msra.mxu0 0.0
        %204 = vmatprep.subr.mxu0 0.0
        %205 = vmatpush1.msra.mxu0 0.0
        %206 = vmatprep.subr.mxu0 0.0
        %207 = vmatpush1.msra.mxu0 0.0
        %208 = vmatprep.subr.mxu0 0.0
        %209 = vmatpush1.msra.mxu0 0.0
        %210 = vmatprep.subr.mxu0 0.0
        %211 = vmatpush1.msra.mxu0 0.0
        %212 = vmatprep.subr.mxu0 0.0
        %213 = vmatpush1.msra.mxu0 0.0
        %214 = vmatprep.subr.mxu0 0.0
        %215 = vmatpush1.msra.mxu0 0.0
        %216 = vmatprep.subr.mxu0 0.0
        %217 = vmatpush1.msra.mxu0 0.0
        %218 = vmatprep.subr.mxu0 0.0
        %219 = vmatpush1.msra.mxu0 0.0
        %220 = vmatprep.subr.mxu0 0.0
        %221 = vmatpush1.msra.mxu0 0.0
        %222 = vmatprep.subr.mxu0 0.0
        %223 = vmatpush1.msra.mxu0 0.0
        %224 = vmatprep.subr.mxu0 0.0
        %225 = vmatpush1.msra.mxu0 0.0
        %226 = vmatprep.subr.mxu0 0.0
        %227 = vmatpush1.msra.mxu0 0.0
        %228 = vmatprep.subr.mxu0 0.0
        %229 = vmatpush1.msra.mxu0 0.0
        %230 = vmatprep.subr.mxu0 0.0
        %231 = vmatpush1.msra.mxu0 0.0
        %232 = vmatprep.mubr.f32.mxu0 0.0
        %233 = vmatmul.mubr.f32.gmra.mrb[0].mxu0 %v166
        %v234 = vpop.f32.mrb[0].mxu0
        %v235 = vadd.f32 0.0, %v234
        %v236 = vpop.f32.mrb[0].mxu0
        %237 = vdwg.mxu0
        %v238 = vld [vmem:[#allocation2] sm:$0xff]
        %v239 = vld [vmem:[#allocation2 + $0x8] sm:$0xff]
        %v240 = vld [vmem:[#allocation2 + $0x10] sm:$0xff]
        %v241 = vld [vmem:[#allocation2 + $0x18] sm:$0xff]
        %v242 = vlaneseq
        %v243 = vshrl.u32 %v242, 7
        %v244 = vsub.s32 0, %v243
        %v245 = vrot.slane %v162, %v244
        %vm246 = vcmask 261120
        %v248 = vsel %vm246, %v235, 0
        %250 = vmatprep.subr.mxu0 0.0
        %251 = vmatpush1.msra.mxu0 %v238
        %252 = vmatprep.subr.mxu0 0.0
        %253 = vmatpush1.msra.mxu0 %v239
        %254 = vmatprep.subr.mxu0 0.0
        %255 = vmatpush1.msra.mxu0 %v240
        %256 = vmatprep.subr.mxu0 0.0
        %257 = vmatpush1.msra.mxu0 %v241
        %258 = vmatprep.subr.mxu0 0.0
        %259 = vmatpush1.msra.mxu0 0.0
        %260 = vmatprep.subr.mxu0 0.0
        %261 = vmatpush1.msra.mxu0 0.0
        %262 = vmatprep.subr.mxu0 0.0
        %263 = vmatpush1.msra.mxu0 0.0
        %264 = vmatprep.subr.mxu0 0.0
        %265 = vmatpush1.msra.mxu0 0.0
        %266 = vmatprep.subr.mxu0 0.0
        %267 = vmatpush1.msra.mxu0 0.0
        %268 = vmatprep.subr.mxu0 0.0
        %269 = vmatpush1.msra.mxu0 0.0
        %270 = vmatprep.subr.mxu0 0.0
        %271 = vmatpush1.msra.mxu0 0.0
        %272 = vmatprep.subr.mxu0 0.0
        %273 = vmatpush1.msra.mxu0 0.0
        %274 = vmatprep.subr.mxu0 0.0
        %275 = vmatpush1.msra.mxu0 0.0
        %276 = vmatprep.subr.mxu0 0.0
        %277 = vmatpush1.msra.mxu0 0.0
        %278 = vmatprep.subr.mxu0 0.0
        %279 = vmatpush1.msra.mxu0 0.0
        %280 = vmatprep.subr.mxu0 0.0
        %281 = vmatpush1.msra.mxu0 0.0
        %282 = vmatprep.subr.mxu0 0.0
        %283 = vmatpush1.msra.mxu0 0.0
        %284 = vmatprep.subr.mxu0 0.0
        %285 = vmatpush1.msra.mxu0 0.0
        %286 = vmatprep.subr.mxu0 0.0
        %287 = vmatpush1.msra.mxu0 0.0
        %288 = vmatprep.subr.mxu0 0.0
        %289 = vmatpush1.msra.mxu0 0.0
        %290 = vmatprep.subr.mxu0 0.0
        %291 = vmatpush1.msra.mxu0 0.0
        %292 = vmatprep.subr.mxu0 0.0
        %293 = vmatpush1.msra.mxu0 0.0
        %294 = vmatprep.subr.mxu0 0.0
        %295 = vmatpush1.msra.mxu0 0.0
        %296 = vmatprep.subr.mxu0 0.0
        %297 = vmatpush1.msra.mxu0 0.0
        %298 = vmatprep.subr.mxu0 0.0
        %299 = vmatpush1.msra.mxu0 0.0
        %300 = vmatprep.subr.mxu0 0.0
        %301 = vmatpush1.msra.mxu0 0.0
        %302 = vmatprep.subr.mxu0 0.0
        %303 = vmatpush1.msra.mxu0 0.0
        %304 = vmatprep.subr.mxu0 0.0
        %305 = vmatpush1.msra.mxu0 0.0
        %306 = vmatprep.subr.mxu0 0.0
        %307 = vmatpush1.msra.mxu0 0.0
        %308 = vmatprep.subr.mxu0 0.0
        %309 = vmatpush1.msra.mxu0 0.0
        %310 = vmatprep.subr.mxu0 0.0
        %311 = vmatpush1.msra.mxu0 0.0
        %312 = vmatprep.subr.mxu0 0.0
        %313 = vmatpush1.msra.mxu0 0.0
        %314 = vmatprep.mubr.f32.mxu0 0.0
        %315 = vmatmul.mubr.f32.gmra.mrb[0].mxu0 %v248
        %v316 = vpop.f32.mrb[0].mxu0
        %v317 = vadd.f32 %v245, %v316
        %v318 = vpop.f32.mrb[0].mxu0
        %319 = vdwg.mxu0
        %v320 = vtanh.pop %v317
        %v321 = vld [vmem:[#allocation2 + $0x20] sm:$0xff]
        %v322 = vld [vmem:[#allocation2 + $0x28] sm:$0xff]
        %v323 = vld [vmem:[#allocation2 + $0x30] sm:$0xff]
        %v324 = vld [vmem:[#allocation2 + $0x38] sm:$0xff]
        %326 = vrot.lane.b32.xlu0 %v245, 96
        %v327 = vpop.permute.xlu0 %326
        %v330 = vsel %vm246, %v320, 0
        %332 = vmatprep.subr.mxu0 0.0
        %333 = vmatpush1.msra.mxu0 %v321
        %334 = vmatprep.subr.mxu0 0.0
        %335 = vmatpush1.msra.mxu0 %v322
        %336 = vmatprep.subr.mxu0 0.0
        %337 = vmatpush1.msra.mxu0 %v323
        %338 = vmatprep.subr.mxu0 0.0
        %339 = vmatpush1.msra.mxu0 %v324
        %340 = vmatprep.subr.mxu0 0.0
        %341 = vmatpush1.msra.mxu0 0.0
        %342 = vmatprep.subr.mxu0 0.0
        %343 = vmatpush1.msra.mxu0 0.0
        %344 = vmatprep.subr.mxu0 0.0
        %345 = vmatpush1.msra.mxu0 0.0
        %346 = vmatprep.subr.mxu0 0.0
        %347 = vmatpush1.msra.mxu0 0.0
        %348 = vmatprep.subr.mxu0 0.0
        %349 = vmatpush1.msra.mxu0 0.0
        %350 = vmatprep.subr.mxu0 0.0
        %351 = vmatpush1.msra.mxu0 0.0
        %352 = vmatprep.subr.mxu0 0.0
        %353 = vmatpush1.msra.mxu0 0.0
        %354 = vmatprep.subr.mxu0 0.0
        %355 = vmatpush1.msra.mxu0 0.0
        %356 = vmatprep.subr.mxu0 0.0
        %357 = vmatpush1.msra.mxu0 0.0
        %358 = vmatprep.subr.mxu0 0.0
        %359 = vmatpush1.msra.mxu0 0.0
        %360 = vmatprep.subr.mxu0 0.0
        %361 = vmatpush1.msra.mxu0 0.0
        %362 = vmatprep.subr.mxu0 0.0
        %363 = vmatpush1.msra.mxu0 0.0
        %364 = vmatprep.subr.mxu0 0.0
        %365 = vmatpush1.msra.mxu0 0.0
        %366 = vmatprep.subr.mxu0 0.0
        %367 = vmatpush1.msra.mxu0 0.0
        %368 = vmatprep.subr.mxu0 0.0
        %369 = vmatpush1.msra.mxu0 0.0
        %370 = vmatprep.subr.mxu0 0.0
        %371 = vmatpush1.msra.mxu0 0.0
        %372 = vmatprep.subr.mxu0 0.0
        %373 = vmatpush1.msra.mxu0 0.0
        %374 = vmatprep.subr.mxu0 0.0
        %375 = vmatpush1.msra.mxu0 0.0
        %376 = vmatprep.subr.mxu0 0.0
        %377 = vmatpush1.msra.mxu0 0.0
        %378 = vmatprep.subr.mxu0 0.0
        %379 = vmatpush1.msra.mxu0 0.0
        %380 = vmatprep.subr.mxu0 0.0
        %381 = vmatpush1.msra.mxu0 0.0
        %382 = vmatprep.subr.mxu0 0.0
        %383 = vmatpush1.msra.mxu0 0.0
        %384 = vmatprep.subr.mxu0 0.0
        %385 = vmatpush1.msra.mxu0 0.0
        %386 = vmatprep.subr.mxu0 0.0
        %387 = vmatpush1.msra.mxu0 0.0
        %388 = vmatprep.subr.mxu0 0.0
        %389 = vmatpush1.msra.mxu0 0.0
        %390 = vmatprep.subr.mxu0 0.0
        %391 = vmatpush1.msra.mxu0 0.0
        %392 = vmatprep.subr.mxu0 0.0
        %393 = vmatpush1.msra.mxu0 0.0
        %394 = vmatprep.subr.mxu0 0.0
        %395 = vmatpush1.msra.mxu0 0.0
        %396 = vmatprep.mubr.f32.mxu0 0.0
        %397 = vmatmul.mubr.f32.gmra.mrb[0].mxu0 %v330
        %v398 = vpop.f32.mrb[0].mxu0
        %v399 = vadd.f32 %v327, %v398
        %v400 = vpop.f32.mrb[0].mxu0
        %401 = vdwg.mxu0
        %v402 = vld [vmem:[#allocation2 + $0x150] sm:$0x3f]
        %v403 = vld [vmem:[#allocation2 + $0x40] sm:$0xff]
        %v404 = vld [vmem:[#allocation2 + $0x48] sm:$0xff]
        %v405 = vld [vmem:[#allocation2 + $0x50] sm:$0xff]
        %v406 = vld [vmem:[#allocation2 + $0x58] sm:$0xff]
        %v407 = vld [vmem:[#allocation2 + $0x60] sm:$0xff]
        %v408 = vld [vmem:[#allocation2 + $0x68] sm:$0xff]
        %v409 = vld [vmem:[#allocation2 + $0x70] sm:$0xff]
        %v410 = vld [vmem:[#allocation2 + $0x78] sm:$0xff]
        %v411 = vld [vmem:[#allocation2 + $0x80] sm:$0xff]
        %v412 = vld [vmem:[#allocation2 + $0x88] sm:$0xff]
        %v413 = vld [vmem:[#allocation2 + $0x90] sm:$0xff]
        %v414 = vld [vmem:[#allocation2 + $0x98] sm:$0xff]
        %v415 = vld [vmem:[#allocation2 + $0xa0] sm:$0xff]
        %v416 = vld [vmem:[#allocation2 + $0xa8] sm:$0xff]
        %v417 = vld [vmem:[#allocation2 + $0xb0] sm:$0xff]
        %v418 = vld [vmem:[#allocation2 + $0xb8] sm:$0xff]
        %419 = vmatprep.subr.mxu0 0.0
        %420 = vmatpush1.msra.mxu0 %v403
        %421 = vmatprep.subr.mxu0 0.0
        %422 = vmatpush1.msra.mxu0 %v404
        %423 = vmatprep.subr.mxu0 0.0
        %424 = vmatpush1.msra.mxu0 %v405
        %425 = vmatprep.subr.mxu0 0.0
        %426 = vmatpush1.msra.mxu0 %v406
        %427 = vmatprep.subr.mxu0 0.0
        %428 = vmatpush1.msra.mxu0 %v407
        %429 = vmatprep.subr.mxu0 0.0
        %430 = vmatpush1.msra.mxu0 %v408
        %431 = vmatprep.subr.mxu0 0.0
        %432 = vmatpush1.msra.mxu0 %v409
        %433 = vmatprep.subr.mxu0 0.0
        %434 = vmatpush1.msra.mxu0 %v410
        %435 = vmatprep.subr.mxu0 0.0
        %436 = vmatpush1.msra.mxu0 %v411
        %437 = vmatprep.subr.mxu0 0.0
        %438 = vmatpush1.msra.mxu0 %v412
        %439 = vmatprep.subr.mxu0 0.0
        %440 = vmatpush1.msra.mxu0 %v413
        %441 = vmatprep.subr.mxu0 0.0
        %442 = vmatpush1.msra.mxu0 %v414
        %443 = vmatprep.subr.mxu0 0.0
        %444 = vmatpush1.msra.mxu0 %v415
        %445 = vmatprep.subr.mxu0 0.0
        %446 = vmatpush1.msra.mxu0 %v416
        %447 = vmatprep.subr.mxu0 0.0
        %448 = vmatpush1.msra.mxu0 %v417
        %449 = vmatprep.subr.mxu0 0.0
        %450 = vmatpush1.msra.mxu0 %v418
        %451 = vmatprep.subr.mxu0 0.0
        %452 = vmatpush1.msra.mxu0 0.0
        %453 = vmatprep.subr.mxu0 0.0
        %454 = vmatpush1.msra.mxu0 0.0
        %455 = vmatprep.subr.mxu0 0.0
        %456 = vmatpush1.msra.mxu0 0.0
        %457 = vmatprep.subr.mxu0 0.0
        %458 = vmatpush1.msra.mxu0 0.0
        %459 = vmatprep.subr.mxu0 0.0
        %460 = vmatpush1.msra.mxu0 0.0
        %461 = vmatprep.subr.mxu0 0.0
        %462 = vmatpush1.msra.mxu0 0.0
        %463 = vmatprep.subr.mxu0 0.0
        %464 = vmatpush1.msra.mxu0 0.0
        %465 = vmatprep.subr.mxu0 0.0
        %466 = vmatpush1.msra.mxu0 0.0
        %467 = vmatprep.subr.mxu0 0.0
        %468 = vmatpush1.msra.mxu0 0.0
        %469 = vmatprep.subr.mxu0 0.0
        %470 = vmatpush1.msra.mxu0 0.0
        %471 = vmatprep.subr.mxu0 0.0
        %472 = vmatpush1.msra.mxu0 0.0
        %473 = vmatprep.subr.mxu0 0.0
        %474 = vmatpush1.msra.mxu0 0.0
        %475 = vmatprep.subr.mxu0 0.0
        %476 = vmatpush1.msra.mxu0 0.0
        %477 = vmatprep.subr.mxu0 0.0
        %478 = vmatpush1.msra.mxu0 0.0
        %479 = vmatprep.subr.mxu0 0.0
        %480 = vmatpush1.msra.mxu0 0.0
        %481 = vmatprep.subr.mxu0 0.0
        %482 = vmatpush1.msra.mxu0 0.0
        %483 = vmatprep.mubr.f32.mxu0 0.0
        %484 = vmatmul.mubr.f32.gmra.mrb[0].mxu0 %v161
        %v485 = vpop.f32.mrb[0].mxu0
        %v486 = vadd.f32 0.0, %v485
        %v487 = vpop.f32.mrb[0].mxu0
        %488 = vdwg.mxu0
        %vm489 = vcmask 15360
        %v491 = vsel %vm489, %v402, 0
        %vm493 = vcmask 1041408
        %v495 = vsel %vm493, %v399, 0
        %497 = vmatprep.subr.mxu0 0.0
        %498 = vmatpush1.msra.mxu0 %v495
        %499 = vmatprep.subr.mxu0 0.0
        %500 = vmatpush1.msra.mxu0 0.0
        %501 = vmatprep.subr.mxu0 0.0
        %502 = vmatpush1.msra.mxu0 0.0
        %503 = vmatprep.subr.mxu0 0.0
        %504 = vmatpush1.msra.mxu0 0.0
        %505 = vmatprep.subr.mxu0 0.0
        %506 = vmatpush1.msra.mxu0 0.0
        %507 = vmatprep.subr.mxu0 0.0
        %508 = vmatpush1.msra.mxu0 0.0
        %509 = vmatprep.subr.mxu0 0.0
        %510 = vmatpush1.msra.mxu0 0.0
        %511 = vmatprep.subr.mxu0 0.0
        %512 = vmatpush1.msra.mxu0 0.0
        %513 = vmatprep.subr.mxu0 0.0
        %514 = vmatpush1.msra.mxu0 0.0
        %515 = vmatprep.subr.mxu0 0.0
        %516 = vmatpush1.msra.mxu0 0.0
        %517 = vmatprep.subr.mxu0 0.0
        %518 = vmatpush1.msra.mxu0 0.0
        %519 = vmatprep.subr.mxu0 0.0
        %520 = vmatpush1.msra.mxu0 0.0
        %521 = vmatprep.subr.mxu0 0.0
        %522 = vmatpush1.msra.mxu0 0.0
        %523 = vmatprep.subr.mxu0 0.0
        %524 = vmatpush1.msra.mxu0 0.0
        %525 = vmatprep.subr.mxu0 0.0
        %526 = vmatpush1.msra.mxu0 0.0
        %527 = vmatprep.subr.mxu0 0.0
        %528 = vmatpush1.msra.mxu0 0.0
        %529 = vmatprep.subr.mxu0 0.0
        %530 = vmatpush1.msra.mxu0 0.0
        %531 = vmatprep.subr.mxu0 0.0
        %532 = vmatpush1.msra.mxu0 0.0
        %533 = vmatprep.subr.mxu0 0.0
        %534 = vmatpush1.msra.mxu0 0.0
        %535 = vmatprep.subr.mxu0 0.0
        %536 = vmatpush1.msra.mxu0 0.0
        %537 = vmatprep.subr.mxu0 0.0
        %538 = vmatpush1.msra.mxu0 0.0
        %539 = vmatprep.subr.mxu0 0.0
        %540 = vmatpush1.msra.mxu0 0.0
        %541 = vmatprep.subr.mxu0 0.0
        %542 = vmatpush1.msra.mxu0 0.0
        %543 = vmatprep.subr.mxu0 0.0
        %544 = vmatpush1.msra.mxu0 0.0
        %545 = vmatprep.subr.mxu0 0.0
        %546 = vmatpush1.msra.mxu0 0.0
        %547 = vmatprep.subr.mxu0 0.0
        %548 = vmatpush1.msra.mxu0 0.0
        %549 = vmatprep.subr.mxu0 0.0
        %550 = vmatpush1.msra.mxu0 0.0
        %551 = vmatprep.subr.mxu0 0.0
        %552 = vmatpush1.msra.mxu0 0.0
        %553 = vmatprep.subr.mxu0 0.0
        %554 = vmatpush1.msra.mxu0 0.0
        %555 = vmatprep.subr.mxu0 0.0
        %556 = vmatpush1.msra.mxu0 0.0
        %557 = vmatprep.subr.mxu0 0.0
        %558 = vmatpush1.msra.mxu0 0.0
        %559 = vmatprep.subr.mxu0 0.0
        %560 = vmatpush1.msra.mxu0 0.0
        %561 = vmatprep.mubr.f32.mxu0 0.0
        %562 = vmatmul.mubr.f32.gmra.mrb[0].mxu0 %v491
        %v563 = vpop.f32.mrb[0].mxu0
        %v564 = vadd.f32 %v486, %v563
        %v565 = vpop.f32.mrb[0].mxu0
        %566 = vdwg.mxu0
        %v567 = vmax.f32 %v564, 0.0
        %v568 = vld [vmem:[#allocation2 + $0xc0] sm:$0xff]
        %v569 = vld [vmem:[#allocation2 + $0xc8] sm:$0xff]
        %v570 = vld [vmem:[#allocation2 + $0xd0] sm:$0xff]
        %v571 = vld [vmem:[#allocation2 + $0xd8] sm:$0xff]
        %v572 = vld [vmem:[#allocation2 + $0xe0] sm:$0xff]
        %v573 = vld [vmem:[#allocation2 + $0xe8] sm:$0xff]
        %v574 = vld [vmem:[#allocation2 + $0xf0] sm:$0xff]
        %v575 = vld [vmem:[#allocation2 + $0xf8] sm:$0xff]
        %576 = vrot.lane.b32.xlu0 %v245, 32
        %v577 = vpop.permute.xlu0 %576
        %vm579 = vcmask 523264
        %v581 = vsel %vm579, %v567, 0
        %583 = vmatprep.subr.mxu0 0.0
        %584 = vmatpush1.msra.mxu0 %v568
        %585 = vmatprep.subr.mxu0 0.0
        %586 = vmatpush1.msra.mxu0 %v569
        %587 = vmatprep.subr.mxu0 0.0
        %588 = vmatpush1.msra.mxu0 %v570
        %589 = vmatprep.subr.mxu0 0.0
        %590 = vmatpush1.msra.mxu0 %v571
        %591 = vmatprep.subr.mxu0 0.0
        %592 = vmatpush1.msra.mxu0 %v572
        %593 = vmatprep.subr.mxu0 0.0
        %594 = vmatpush1.msra.mxu0 %v573
        %595 = vmatprep.subr.mxu0 0.0
        %596 = vmatpush1.msra.mxu0 %v574
        %597 = vmatprep.subr.mxu0 0.0
        %598 = vmatpush1.msra.mxu0 %v575
        %599 = vmatprep.subr.mxu0 0.0
        %600 = vmatpush1.msra.mxu0 0.0
        %601 = vmatprep.subr.mxu0 0.0
        %602 = vmatpush1.msra.mxu0 0.0
        %603 = vmatprep.subr.mxu0 0.0
        %604 = vmatpush1.msra.mxu0 0.0
        %605 = vmatprep.subr.mxu0 0.0
        %606 = vmatpush1.msra.mxu0 0.0
        %607 = vmatprep.subr.mxu0 0.0
        %608 = vmatpush1.msra.mxu0 0.0
        %609 = vmatprep.subr.mxu0 0.0
        %610 = vmatpush1.msra.mxu0 0.0
        %611 = vmatprep.subr.mxu0 0.0
        %612 = vmatpush1.msra.mxu0 0.0
        %613 = vmatprep.subr.mxu0 0.0
        %614 = vmatpush1.msra.mxu0 0.0
        %615 = vmatprep.subr.mxu0 0.0
        %616 = vmatpush1.msra.mxu0 0.0
        %617 = vmatprep.subr.mxu0 0.0
        %618 = vmatpush1.msra.mxu0 0.0
        %619 = vmatprep.subr.mxu0 0.0
        %620 = vmatpush1.msra.mxu0 0.0
        %621 = vmatprep.subr.mxu0 0.0
        %622 = vmatpush1.msra.mxu0 0.0
        %623 = vmatprep.subr.mxu0 0.0
        %624 = vmatpush1.msra.mxu0 0.0
        %625 = vmatprep.subr.mxu0 0.0
        %626 = vmatpush1.msra.mxu0 0.0
        %627 = vmatprep.subr.mxu0 0.0
        %628 = vmatpush1.msra.mxu0 0.0
        %629 = vmatprep.subr.mxu0 0.0
        %630 = vmatpush1.msra.mxu0 0.0
        %631 = vmatprep.subr.mxu0 0.0
        %632 = vmatpush1.msra.mxu0 0.0
        %633 = vmatprep.subr.mxu0 0.0
        %634 = vmatpush1.msra.mxu0 0.0
        %635 = vmatprep.subr.mxu0 0.0
        %636 = vmatpush1.msra.mxu0 0.0
        %637 = vmatprep.subr.mxu0 0.0
        %638 = vmatpush1.msra.mxu0 0.0
        %639 = vmatprep.subr.mxu0 0.0
        %640 = vmatpush1.msra.mxu0 0.0
        %641 = vmatprep.subr.mxu0 0.0
        %642 = vmatpush1.msra.mxu0 0.0
        %643 = vmatprep.subr.mxu0 0.0
        %644 = vmatpush1.msra.mxu0 0.0
        %645 = vmatprep.subr.mxu0 0.0
        %646 = vmatpush1.msra.mxu0 0.0
        %647 = vmatprep.mubr.f32.mxu0 0.0
        %648 = vmatmul.mubr.f32.gmra.mrb[0].mxu0 %v581
        %v649 = vpop.f32.mrb[0].mxu0
        %v650 = vadd.f32 %v577, %v649
        %v651 = vpop.f32.mrb[0].mxu0
        %652 = vdwg.mxu0
        %v653 = vld [vmem:[#allocation2 + $0x138] sm:$0x1]
        %v654 = vld [vmem:[#allocation2 + $0x100] sm:$0xff]
        %v655 = vld [vmem:[#allocation2 + $0x108] sm:$0xff]
        %v657 = vsel %vm164, %v650, 0
        %659 = vmatprep.subr.mxu0 0.0
        %660 = vmatpush1.msra.mxu0 %v654
        %661 = vmatprep.subr.mxu0 0.0
        %662 = vmatpush1.msra.mxu0 %v655
        %663 = vmatprep.subr.mxu0 0.0
        %664 = vmatpush1.msra.mxu0 0.0
        %665 = vmatprep.subr.mxu0 0.0
        %666 = vmatpush1.msra.mxu0 0.0
        %667 = vmatprep.subr.mxu0 0.0
        %668 = vmatpush1.msra.mxu0 0.0
        %669 = vmatprep.subr.mxu0 0.0
        %670 = vmatpush1.msra.mxu0 0.0
        %671 = vmatprep.subr.mxu0 0.0
        %672 = vmatpush1.msra.mxu0 0.0
        %673 = vmatprep.subr.mxu0 0.0
        %674 = vmatpush1.msra.mxu0 0.0
        %675 = vmatprep.subr.mxu0 0.0
        %676 = vmatpush1.msra.mxu0 0.0
        %677 = vmatprep.subr.mxu0 0.0
        %678 = vmatpush1.msra.mxu0 0.0
        %679 = vmatprep.subr.mxu0 0.0
        %680 = vmatpush1.msra.mxu0 0.0
        %681 = vmatprep.subr.mxu0 0.0
        %682 = vmatpush1.msra.mxu0 0.0
        %683 = vmatprep.subr.mxu0 0.0
        %684 = vmatpush1.msra.mxu0 0.0
        %685 = vmatprep.subr.mxu0 0.0
        %686 = vmatpush1.msra.mxu0 0.0
        %687 = vmatprep.subr.mxu0 0.0
        %688 = vmatpush1.msra.mxu0 0.0
        %689 = vmatprep.subr.mxu0 0.0
        %690 = vmatpush1.msra.mxu0 0.0
        %691 = vmatprep.subr.mxu0 0.0
        %692 = vmatpush1.msra.mxu0 0.0
        %693 = vmatprep.subr.mxu0 0.0
        %694 = vmatpush1.msra.mxu0 0.0
        %695 = vmatprep.subr.mxu0 0.0
        %696 = vmatpush1.msra.mxu0 0.0
        %697 = vmatprep.subr.mxu0 0.0
        %698 = vmatpush1.msra.mxu0 0.0
        %699 = vmatprep.subr.mxu0 0.0
        %700 = vmatpush1.msra.mxu0 0.0
        %701 = vmatprep.subr.mxu0 0.0
        %702 = vmatpush1.msra.mxu0 0.0
        %703 = vmatprep.subr.mxu0 0.0
        %704 = vmatpush1.msra.mxu0 0.0
        %705 = vmatprep.subr.mxu0 0.0
        %706 = vmatpush1.msra.mxu0 0.0
        %707 = vmatprep.subr.mxu0 0.0
        %708 = vmatpush1.msra.mxu0 0.0
        %709 = vmatprep.subr.mxu0 0.0
        %710 = vmatpush1.msra.mxu0 0.0
        %711 = vmatprep.subr.mxu0 0.0
        %712 = vmatpush1.msra.mxu0 0.0
        %713 = vmatprep.subr.mxu0 0.0
        %714 = vmatpush1.msra.mxu0 0.0
        %715 = vmatprep.subr.mxu0 0.0
        %716 = vmatpush1.msra.mxu0 0.0
        %717 = vmatprep.subr.mxu0 0.0
        %718 = vmatpush1.msra.mxu0 0.0
        %719 = vmatprep.subr.mxu0 0.0
        %720 = vmatpush1.msra.mxu0 0.0
        %721 = vmatprep.subr.mxu0 0.0
        %722 = vmatpush1.msra.mxu0 0.0
        %723 = vmatprep.mubr.f32.mxu0 0.0
        %724 = vmatmul.mubr.f32.gmra.mrb[0].mxu0 %v657
        %v725 = vpop.f32.mrb[0].mxu0
        %v726 = vadd.f32 0.0, %v725
        %v727 = vpop.f32.mrb[0].mxu0
        %728 = vdwg.mxu0
        %v729 = vlaneseq
        %v730 = vshrl.u32 %v729, 7
        %v731 = vsub.s32 0, %v730
        %v732 = vrot.slane %v653, %v731
        %v733 = vadd.f32 %v732, %v726
        %v734 = vld [vmem:[#allocation2 + $0x110] sm:$0xff]
        %v735 = vld [vmem:[#allocation2 + $0x118] sm:$0xff]
        %v736 = vrot.slane %v650, 2
        %v737 = vsel %vm164, %v736, 0
        %739 = vmatprep.subr.mxu0 0.0
        %740 = vmatpush1.msra.mxu0 %v734
        %741 = vmatprep.subr.mxu0 0.0
        %742 = vmatpush1.msra.mxu0 %v735
        %743 = vmatprep.subr.mxu0 0.0
        %744 = vmatpush1.msra.mxu0 0.0
        %745 = vmatprep.subr.mxu0 0.0
        %746 = vmatpush1.msra.mxu0 0.0
        %747 = vmatprep.subr.mxu0 0.0
        %748 = vmatpush1.msra.mxu0 0.0
        %749 = vmatprep.subr.mxu0 0.0
        %750 = vmatpush1.msra.mxu0 0.0
        %751 = vmatprep.subr.mxu0 0.0
        %752 = vmatpush1.msra.mxu0 0.0
        %753 = vmatprep.subr.mxu0 0.0
        %754 = vmatpush1.msra.mxu0 0.0
        %755 = vmatprep.subr.mxu0 0.0
        %756 = vmatpush1.msra.mxu0 0.0
        %757 = vmatprep.subr.mxu0 0.0
        %758 = vmatpush1.msra.mxu0 0.0
        %759 = vmatprep.subr.mxu0 0.0
        %760 = vmatpush1.msra.mxu0 0.0
        %761 = vmatprep.subr.mxu0 0.0
        %762 = vmatpush1.msra.mxu0 0.0
        %763 = vmatprep.subr.mxu0 0.0
        %764 = vmatpush1.msra.mxu0 0.0
        %765 = vmatprep.subr.mxu0 0.0
        %766 = vmatpush1.msra.mxu0 0.0
        %767 = vmatprep.subr.mxu0 0.0
        %768 = vmatpush1.msra.mxu0 0.0
        %769 = vmatprep.subr.mxu0 0.0
        %770 = vmatpush1.msra.mxu0 0.0
        %771 = vmatprep.subr.mxu0 0.0
        %772 = vmatpush1.msra.mxu0 0.0
        %773 = vmatprep.subr.mxu0 0.0
        %774 = vmatpush1.msra.mxu0 0.0
        %775 = vmatprep.subr.mxu0 0.0
        %776 = vmatpush1.msra.mxu0 0.0
        %777 = vmatprep.subr.mxu0 0.0
        %778 = vmatpush1.msra.mxu0 0.0
        %779 = vmatprep.subr.mxu0 0.0
        %780 = vmatpush1.msra.mxu0 0.0
        %781 = vmatprep.subr.mxu0 0.0
        %782 = vmatpush1.msra.mxu0 0.0
        %783 = vmatprep.subr.mxu0 0.0
        %784 = vmatpush1.msra.mxu0 0.0
        %785 = vmatprep.subr.mxu0 0.0
        %786 = vmatpush1.msra.mxu0 0.0
        %787 = vmatprep.subr.mxu0 0.0
        %788 = vmatpush1.msra.mxu0 0.0
        %789 = vmatprep.subr.mxu0 0.0
        %790 = vmatpush1.msra.mxu0 0.0
        %791 = vmatprep.subr.mxu0 0.0
        %792 = vmatpush1.msra.mxu0 0.0
        %793 = vmatprep.subr.mxu0 0.0
        %794 = vmatpush1.msra.mxu0 0.0
        %795 = vmatprep.subr.mxu0 0.0
        %796 = vmatpush1.msra.mxu0 0.0
        %797 = vmatprep.subr.mxu0 0.0
        %798 = vmatpush1.msra.mxu0 0.0
        %799 = vmatprep.subr.mxu0 0.0
        %800 = vmatpush1.msra.mxu0 0.0
        %801 = vmatprep.subr.mxu0 0.0
        %802 = vmatpush1.msra.mxu0 0.0
        %803 = vmatprep.mubr.f32.mxu0 0.0
        %804 = vmatmul.mubr.f32.gmra.mrb[0].mxu0 %v737
        %v805 = vpop.f32.mrb[0].mxu0
        %v806 = vadd.f32 0.0, %v805
        %v807 = vpop.f32.mrb[0].mxu0
        %808 = vdwg.mxu0
        %v809 = vadd.f32 %v733, %v806
        %v810 = vld [vmem:[#allocation2 + $0x120] sm:$0xff]
        %v811 = vld [vmem:[#allocation2 + $0x128] sm:$0xff]
        %v812 = vrot.slane %v650, 4
        %v813 = vsel %vm164, %v812, 0
        %815 = vmatprep.subr.mxu0 0.0
        %816 = vmatpush1.msra.mxu0 %v810
        %817 = vmatprep.subr.mxu0 0.0
        %818 = vmatpush1.msra.mxu0 %v811
        %819 = vmatprep.subr.mxu0 0.0
        %820 = vmatpush1.msra.mxu0 0.0
        %821 = vmatprep.subr.mxu0 0.0
        %822 = vmatpush1.msra.mxu0 0.0
        %823 = vmatprep.subr.mxu0 0.0
        %824 = vmatpush1.msra.mxu0 0.0
        %825 = vmatprep.subr.mxu0 0.0
        %826 = vmatpush1.msra.mxu0 0.0
        %827 = vmatprep.subr.mxu0 0.0
        %828 = vmatpush1.msra.mxu0 0.0
        %829 = vmatprep.subr.mxu0 0.0
        %830 = vmatpush1.msra.mxu0 0.0
        %831 = vmatprep.subr.mxu0 0.0
        %832 = vmatpush1.msra.mxu0 0.0
        %833 = vmatprep.subr.mxu0 0.0
        %834 = vmatpush1.msra.mxu0 0.0
        %835 = vmatprep.subr.mxu0 0.0
        %836 = vmatpush1.msra.mxu0 0.0
        %837 = vmatprep.subr.mxu0 0.0
        %838 = vmatpush1.msra.mxu0 0.0
        %839 = vmatprep.subr.mxu0 0.0
        %840 = vmatpush1.msra.mxu0 0.0
        %841 = vmatprep.subr.mxu0 0.0
        %842 = vmatpush1.msra.mxu0 0.0
        %843 = vmatprep.subr.mxu0 0.0
        %844 = vmatpush1.msra.mxu0 0.0
        %845 = vmatprep.subr.mxu0 0.0
        %846 = vmatpush1.msra.mxu0 0.0
        %847 = vmatprep.subr.mxu0 0.0
        %848 = vmatpush1.msra.mxu0 0.0
        %849 = vmatprep.subr.mxu0 0.0
        %850 = vmatpush1.msra.mxu0 0.0
        %851 = vmatprep.subr.mxu0 0.0
        %852 = vmatpush1.msra.mxu0 0.0
        %853 = vmatprep.subr.mxu0 0.0
        %854 = vmatpush1.msra.mxu0 0.0
        %855 = vmatprep.subr.mxu0 0.0
        %856 = vmatpush1.msra.mxu0 0.0
        %857 = vmatprep.subr.mxu0 0.0
        %858 = vmatpush1.msra.mxu0 0.0
        %859 = vmatprep.subr.mxu0 0.0
        %860 = vmatpush1.msra.mxu0 0.0
        %861 = vmatprep.subr.mxu0 0.0
        %862 = vmatpush1.msra.mxu0 0.0
        %863 = vmatprep.subr.mxu0 0.0
        %864 = vmatpush1.msra.mxu0 0.0
        %865 = vmatprep.subr.mxu0 0.0
        %866 = vmatpush1.msra.mxu0 0.0
        %867 = vmatprep.subr.mxu0 0.0
        %868 = vmatpush1.msra.mxu0 0.0
        %869 = vmatprep.subr.mxu0 0.0
        %870 = vmatpush1.msra.mxu0 0.0
        %871 = vmatprep.subr.mxu0 0.0
        %872 = vmatpush1.msra.mxu0 0.0
        %873 = vmatprep.subr.mxu0 0.0
        %874 = vmatpush1.msra.mxu0 0.0
        %875 = vmatprep.subr.mxu0 0.0
        %876 = vmatpush1.msra.mxu0 0.0
        %877 = vmatprep.subr.mxu0 0.0
        %878 = vmatpush1.msra.mxu0 0.0
        %879 = vmatprep.mubr.f32.mxu0 0.0
        %880 = vmatmul.mubr.f32.gmra.mrb[0].mxu0 %v813
        %v881 = vpop.f32.mrb[0].mxu0
        %v882 = vadd.f32 0.0, %v881
        %v883 = vpop.f32.mrb[0].mxu0
        %884 = vdwg.mxu0
        %v885 = vadd.f32 %v809, %v882
        %v886 = vld [vmem:[#allocation2 + $0x140] sm:$0x1]
        %vm887 = vcmp.lt.f32.partialorder %v886, 3.0
        %v888 = vsel %vm887, 1, 0
        %v889 = vlaneseq
        %v890 = vshrl.u32 %v889, 7
        %v891 = vsub.s32 0, %v890
        %v892 = vrot.slane %v888, %v891
        %vm893 = vcmp.eq.s32.totalorder %v892, 1
        %v894 = vsel %vm893, %v885, -1e+30
        %v895 = vsel %vm493, %v894, -inf
        %896 = vmax.xlane.f32.xlu0 %v895
        %v897 = vpop.xlane.xlu0 %896
        %vm898 = vcmp.eq.f32.partialorder %v894, %v897
        %vm899 = vmand %vm898, %vm893
        %v900 = vlaneseq
        %v901 = vshrl.u32 %v900, 7
        %v902 = vsub.s32 0, %v901
        %v903 = vrot.slane %v886, %v902
        %v904 = vsel %vm899, %v903, 128.0
        %v905 = vsel %vm493, %v904, inf
        %906 = vmin.xlane.f32.xlu0 %v905
        %v907 = vpop.xlane.xlu0 %906
        %vm908 = vcmp.eq.f32.partialorder %v886, 3.0
        %v909 = vsel %vm908, 1, 0
        %v910 = vlaneseq
        %v911 = vshrl.u32 %v910, 7
        %v912 = vsub.s32 0, %v911
        %v913 = vrot.slane %v909, %v912
        %vm914 = vcmp.eq.s32.totalorder %v913, 1
        %v915 = vsel %vm914, %v907, 0.0
        %v916 = vadd.f32 %v885, %v915
        %v917 = vld [vmem:[#allocation2 + $0x158] sm:$0xff]
        %v919 = vsel %vm489, %v917, 0
        %v922 = vsel %vm493, %v916, 0
        %924 = vmatprep.subr.mxu0 0.0
        %925 = vmatpush1.msra.mxu0 %v922
        %926 = vmatprep.subr.mxu0 0.0
        %927 = vmatpush1.msra.mxu0 0.0
        %928 = vmatprep.subr.mxu0 0.0
        %929 = vmatpush1.msra.mxu0 0.0
        %930 = vmatprep.subr.mxu0 0.0
        %931 = vmatpush1.msra.mxu0 0.0
        %932 = vmatprep.subr.mxu0 0.0
        %933 = vmatpush1.msra.mxu0 0.0
        %934 = vmatprep.subr.mxu0 0.0
        %935 = vmatpush1.msra.mxu0 0.0
        %936 = vmatprep.subr.mxu0 0.0
        %937 = vmatpush1.msra.mxu0 0.0
        %938 = vmatprep.subr.mxu0 0.0
        %939 = vmatpush1.msra.mxu0 0.0
        %940 = vmatprep.subr.mxu0 0.0
        %941 = vmatpush1.msra.mxu0 0.0
        %942 = vmatprep.subr.mxu0 0.0
        %943 = vmatpush1.msra.mxu0 0.0
        %944 = vmatprep.subr.mxu0 0.0
        %945 = vmatpush1.msra.mxu0 0.0
        %946 = vmatprep.subr.mxu0 0.0
        %947 = vmatpush1.msra.mxu0 0.0
        %948 = vmatprep.subr.mxu0 0.0
        %949 = vmatpush1.msra.mxu0 0.0
        %950 = vmatprep.subr.mxu0 0.0
        %951 = vmatpush1.msra.mxu0 0.0
        %952 = vmatprep.subr.mxu0 0.0
        %953 = vmatpush1.msra.mxu0 0.0
        %954 = vmatprep.subr.mxu0 0.0
        %955 = vmatpush1.msra.mxu0 0.0
        %956 = vmatprep.subr.mxu0 0.0
        %957 = vmatpush1.msra.mxu0 0.0
        %958 = vmatprep.subr.mxu0 0.0
        %959 = vmatpush1.msra.mxu0 0.0
        %960 = vmatprep.subr.mxu0 0.0
        %961 = vmatpush1.msra.mxu0 0.0
        %962 = vmatprep.subr.mxu0 0.0
        %963 = vmatpush1.msra.mxu0 0.0
        %964 = vmatprep.subr.mxu0 0.0
        %965 = vmatpush1.msra.mxu0 0.0
        %966 = vmatprep.subr.mxu0 0.0
        %967 = vmatpush1.msra.mxu0 0.0
        %968 = vmatprep.subr.mxu0 0.0
        %969 = vmatpush1.msra.mxu0 0.0
        %970 = vmatprep.subr.mxu0 0.0
        %971 = vmatpush1.msra.mxu0 0.0
        %972 = vmatprep.subr.mxu0 0.0
        %973 = vmatpush1.msra.mxu0 0.0
        %974 = vmatprep.subr.mxu0 0.0
        %975 = vmatpush1.msra.mxu0 0.0
        %976 = vmatprep.subr.mxu0 0.0
        %977 = vmatpush1.msra.mxu0 0.0
        %978 = vmatprep.subr.mxu0 0.0
        %979 = vmatpush1.msra.mxu0 0.0
        %980 = vmatprep.subr.mxu0 0.0
        %981 = vmatpush1.msra.mxu0 0.0
        %982 = vmatprep.subr.mxu0 0.0
        %983 = vmatpush1.msra.mxu0 0.0
        %984 = vmatprep.subr.mxu0 0.0
        %985 = vmatpush1.msra.mxu0 0.0
        %986 = vmatprep.subr.mxu0 0.0
        %987 = vmatpush1.msra.mxu0 0.0
        %988 = vmatprep.mubr.f32.mxu0 0.0
        %989 = vmatmul.mubr.f32.gmra.mrb[0].mxu0 %v919
        %v990 = vpop.f32.mrb[0].mxu0
        %v991 = vadd.f32 0.0, %v990
        %v992 = vpop.f32.mrb[0].mxu0
        %993 = vdwg.mxu0
        %994 = vst [vmem:[%s158] sm:$0xff] %v991
        %p995 = scmp.lt.s32.totalorder %s14, 1
        %s996 = scalar_select %p995, %s14, 1
        %s997 = smul.addr %s996, 8
        %s998 = scalar_lea.vmem %s2, %s997
        // Predicated region
        $region33: #{gaia_forward.1} parent=27 // pred_check
          %p999 = pneg %p79
        $region34: #{gaia_forward.1} parent=27 // pred_check_branch
          %1001 = sbr.rel (%p999) target = $region36
        $region35: #{gaia_forward.1} parent=27 // pred_region
          _
        $region36: #{gaia_forward.1} parent=27 // pred_fallthru
          _
      $region28: #{gaia_forward.1} parent=5 // pred_fallthru
        _
      %p1002 = scmp.le.s32.totalorder 2, %s9
      // Predicated region
      $region37: #{gaia_forward.1} parent=5 // pred_check
        %p1003 = pneg %p1002
      $region38: #{gaia_forward.1} parent=5 // pred_check_branch
        %1005 = sbr.rel (%p1003) target = $region40
      $region39: #{gaia_forward.1} parent=5 // pred_region
        %s1006 = ssub.s32 %s9, 2
        // Predicated region
        $region41: #{gaia_forward.1} parent=39 // pred_check
          %p1007 = pneg %p85
        $region42: #{gaia_forward.1} parent=39 // pred_check_branch
          %1009 = sbr.rel (%p1007) target = $region44
        $region43: #{gaia_forward.1} parent=39 // pred_region
          %p1010 = scmp.lt.s32.totalorder %s15, 1
          %s1011 = scalar_select %p1010, %s15, 1
          %s1012 = smul.addr %s1011, 8
          %s1013 = scalar_lea.vmem %s2, %s1012
        $region44: #{gaia_forward.1} parent=39 // pred_fallthru
          _
      $region40: #{gaia_forward.1} parent=5 // pred_fallthru
        _
    $region6: #{gaia_forward.1} parent=1 // loop_footer
      %s13 = sadd.s32 1, %s9
    $region7: #{gaia_forward.1} parent=1 // loop_footer_branch
      %8 = sbr.rel target = $region3
    $region8: #{gaia_forward.1} parent=1 // loop_exit
      _
    %1014 = vsyncpa [#allocation3], 1
    %s1015 = scalar_lea.sflag [#allocation3], 1
    %1016 = vsyncpa %s1015, 1

</llo_original>
